<compile_context>
chip_gen: v7x
topology: tpu7x:2x2x1
jax: 0.10.0
libtpu: 0.0.40
codegen_flags: <defaults>
</compile_context>

<pallas_src>
import math

import jax
import jax.numpy as jnp
from jax import lax
from jax.experimental import pallas as pl
from jax.experimental.pallas import tpu as pltpu

INV_SQRT2 = 1.0 / math.sqrt(2.0)
LN_EPS = 1e-5       # nn.LayerNorm default eps
NORM_EPS = 1e-8     # eps added to the L2 norm in forward()
SUBLANE = 8         # f32 sublane tile; batch is padded to a multiple of this

_VMEM = pl.BlockSpec(memory_space=pltpu.MemorySpace.VMEM)


# ----------------------------------------------------------------------------
# One-time parameter preparation (do NOT call per step).
# ----------------------------------------------------------------------------
def prepare_cfc_params(w_ih, b_ih, w_hh, b_hh, *, weight_dtype=jnp.bfloat16):
    """Fuse / pre-transform the PyTorch parameters once.

    w_ih: (3H, In), w_hh: (3H, H), b_ih/b_hh: (3H,)  (PyTorch Linear layout).

    Returns dict with:
      wx: (In, 3H) bf16  = w_ih.T * (1/sqrt(2))
      wh: (H,  3H) bf16  = w_hh.T * (1/sqrt(2))
      b : (1,  3H) f32   = (b_ih + b_hh) * (1/sqrt(2))
    """
    wx = (jnp.asarray(w_ih, jnp.float32).T * INV_SQRT2).astype(weight_dtype)
    wh = (jnp.asarray(w_hh, jnp.float32).T * INV_SQRT2).astype(weight_dtype)
    b = ((jnp.asarray(b_ih, jnp.float32) + jnp.asarray(b_hh, jnp.float32))
         * INV_SQRT2).reshape(1, -1)
    return {"wx": wx, "wh": wh, "b": b}


# ----------------------------------------------------------------------------
# Shared math (pure jnp/lax; used both in-kernel and in the XLA wrapper).
# ----------------------------------------------------------------------------
def _l2_normalize(v):
    """v / (||v|| + 1e-8) implemented with a single rsqrt (one EUP op).

    rsqrt(sum(v^2) + 1e-16) matches the reference to ~1e-8 relative error for
    non-degenerate vectors and maps the zero vector to zero (h=None path)."""
    ssq = jnp.sum(v * v, axis=-1, keepdims=True)
    return v * lax.rsqrt(ssq + NORM_EPS * NORM_EPS)


def _gates_and_norm(g, h_n):
    """Gate activations + state update + LayerNorm (no affine).

    g:   (B, 3H) f32 pre-activations (bias + 1/sqrt(2) already folded in).
    h_n: (B, H)  f32 normalized previous hidden state.
    """
    H = h_n.shape[-1]
    # One sigmoid over both i and f gates (they share a 64-lane slab of one
    # vreg at H=32), then slice -> one fewer EUP push on the critical chain.
    sig = jax.nn.sigmoid(g[:, : 2 * H])
    i_t = sig[:, 0 * H:1 * H]
    f_t = sig[:, 1 * H:2 * H]
    g_t = jnp.tanh(g[:, 2 * H:3 * H])

    new_h = f_t * h_n + i_t * g_t

    # LayerNorm: var = E[x^2] - mean^2 so the two reductions are independent
    # (they can overlap in the XLU) instead of reduce -> subtract -> reduce.
    mean = jnp.mean(new_h, axis=-1, keepdims=True)
    mean_sq = jnp.mean(new_h * new_h, axis=-1, keepdims=True)
    var = mean_sq - mean * mean
    return (new_h - mean) * lax.rsqrt(var + LN_EPS)


# ----------------------------------------------------------------------------
# Batch padding helper (fill the 8 sublanes of each f32 vreg).
# ----------------------------------------------------------------------------
def _pad_rows(a, rows_padded, axis):
    rows = a.shape[axis]
    if rows == rows_padded:
        return a
    pad = [(0, 0)] * a.ndim
    pad[axis] = (0, rows_padded - rows)
    return jnp.pad(a, pad)


# ----------------------------------------------------------------------------
# Kernel 1 (fallback): single step, matches CfCCell.forward exactly.
# Per-call launch + weight DMA dwarfs the per-step compute; prefer the
# sequence kernel for repeated stepping.
# ----------------------------------------------------------------------------
def _cfc_cell_kernel(x_ref, h_ref, wx_ref, wh_ref, b_ref, out_ref):
    x_n = _l2_normalize(x_ref[...].astype(jnp.float32))
    h_n = _l2_normalize(h_ref[...].astype(jnp.float32))
    # bf16 MXU operands, f32 accumulation; bias pre-summed + pre-scaled.
    g = (jnp.dot(x_n.astype(wx_ref.dtype), wx_ref[...],
                 preferred_element_type=jnp.float32)
         + jnp.dot(h_n.astype(wh_ref.dtype), wh_ref[...],
                   preferred_element_type=jnp.float32)
         + b_ref[...])
    out_ref[...] = _gates_and_norm(g, h_n).astype(out_ref.dtype)


@jax.jit
def _cfc_cell_impl(x, h, wx, wh, b):
    B = x.shape[0]
    H = wh.shape[0]
    B_pad = ((B + SUBLANE - 1) // SUBLANE) * SUBLANE
    x_p = _pad_rows(x, B_pad, 0)
    h_p = _pad_rows(h, B_pad, 0)
    out = pl.pallas_call(
        _cfc_cell_kernel,
        out_shape=jax.ShapeDtypeStruct((B_pad, H), jnp.float32),
        in_specs=[_VMEM] * 5,
        out_specs=_VMEM,
    )(x_p, h_p, wx, wh, b)
    return out[:B]


def cfc_cell_forward(params, x, h=None):
    """Single CfC step. Returns (new_h, output) with new_h == output."""
    x = jnp.asarray(x, jnp.float32)
    H = params["wh"].shape[0]
    if h is None:
        h = jnp.zeros((x.shape[0], H), jnp.float32)
    else:
        h = jnp.asarray(h, jnp.float32)
    new_h = _cfc_cell_impl(x, h, params["wx"], params["wh"], params["b"])
    return new_h, new_h


# ----------------------------------------------------------------------------
# Kernel 2 (primary): whole recurrence inside one pallas_call.
#   - x projection (time-invariant) hoisted out of the loop (done in XLA):
#     kernel receives gx[t] = l2norm(x[t]) @ wx + b and only does the serial
#     h-dependent chain per step.
#   - Grid over 8-row batch blocks, dimension_semantics=("parallel",); weights
#     VMEM-resident (index_map -> (0, 0)); h carried through lax.fori_loop.
# ----------------------------------------------------------------------------
def _cfc_sequence_kernel(gx_ref, h0_ref, wh_ref, out_ref):
    T = gx_ref.shape[0]
    H = out_ref.shape[-1]
    wh = wh_ref[...]                       # resident across all timesteps

    def body(t, h):
        h_n = _l2_normalize(h)
        # One MXU push per step: (TB, H) x (H, 3H); gx already holds the
        # normalized-x projection + fused bias.
        g = gx_ref[t] + jnp.dot(h_n.astype(wh.dtype), wh,
                                preferred_element_type=jnp.float32)
        new_h = _gates_and_norm(g, h_n)
        out_ref[t] = new_h.astype(out_ref.dtype)
        return new_h

    # Bounded partial unroll: keeps LLO scheduling visibility without blowing
    # up instruction count / vreg live ranges at large T.
    lax.fori_loop(0, T, body, h0_ref[...].astype(jnp.float32),
                  unroll=min(T, 4))


@jax.jit
def _cfc_seq_impl(x_seq, h0, wx, wh, b):
    T, B, In = x_seq.shape
    H = wh.shape[0]
    TB = SUBLANE
    B_pad = ((B + TB - 1) // TB) * TB
    x_p = _pad_rows(x_seq, B_pad, 1)
    h_p = _pad_rows(h0, B_pad, 0)

    # ---- hoisted, time-invariant x path (throughput work, runs on the MXU
    # as one (T*B, In)x(In, 3H) matmul in XLA, off the serial chain) ---------
    x_n = _l2_normalize(x_p)
    gx = jnp.dot(x_n.reshape(T * B_pad, In).astype(wx.dtype), wx,
                 preferred_element_type=jnp.float32)
    gx = gx.reshape(T, B_pad, 3 * H) + b          # bias pre-summed/pre-scaled

    # TODO(synk): for long sequences on v7x (64 MiB VMEM), chunk the time axis
    # with an "arbitrary" grid dim (double-buffered gx/out blocks) and carry h
    # in VMEM scratch; the full-resident layout is fine at these sizes.
    out = pl.pallas_call(
        _cfc_sequence_kernel,
        out_shape=jax.ShapeDtypeStruct((T, B_pad, H), jnp.float32),
        grid=(B_pad // TB,),
        in_specs=[
            pl.BlockSpec((T, TB, 3 * H), lambda i: (0, i, 0)),   # gx
            pl.BlockSpec((TB, H), lambda i: (i, 0)),             # h0
            pl.BlockSpec((H, 3 * H), lambda i: (0, 0)),          # wh (resident)
        ],
        out_specs=pl.BlockSpec((T, TB, H), lambda i: (0, i, 0)),
        compiler_params=pltpu.CompilerParams(
            dimension_semantics=("parallel",)),
    )(gx, h_p, wh)
    return out[:, :B, :]


def cfc_cell_sequence(params, x_seq, h0=None):
    """Apply the CfC cell over a whole sequence inside one kernel.

    x_seq: (T, B, In) time-major. Returns (h_last, out_seq) where out_seq[t]
    is the hidden state after step t (identical to iterating
    cfc_cell_forward)."""
    x_seq = jnp.asarray(x_seq, jnp.float32)
    T, B, _ = x_seq.shape
    H = params["wh"].shape[0]
    if h0 is None:
        h0 = jnp.zeros((B, H), jnp.float32)
    else:
        h0 = jnp.asarray(h0, jnp.float32)
    out_seq = _cfc_seq_impl(x_seq, h0, params["wx"], params["wh"], params["b"])
    return out_seq[-1], out_seq


# ----------------------------------------------------------------------------
# Plain-JAX f32 reference mirroring the PyTorch forward (for validation).
# ----------------------------------------------------------------------------
def _reference_step(x, h, w_ih, b_ih, w_hh, b_hh):
    x = x / (jnp.linalg.norm(x, axis=-1, keepdims=True) + NORM_EPS)
    h = h / (jnp.linalg.norm(h, axis=-1, keepdims=True) + NORM_EPS)
    gx = x @ w_ih.T + b_ih
    gh = h @ w_hh.T + b_hh
    i_x, f_x, g_x = jnp.split(gx, 3, axis=1)
    i_h, f_h, g_h = jnp.split(gh, 3, axis=1)
    i_t = jax.nn.sigmoid((i_x + i_h) * INV_SQRT2)
    f_t = jax.nn.sigmoid((f_x + f_h) * INV_SQRT2)
    g_t = jnp.tanh((g_x + g_h) * INV_SQRT2)
    nh = f_t * h + i_t * g_t
    mean = jnp.mean(nh, axis=-1, keepdims=True)
    var = jnp.mean((nh - mean) ** 2, axis=-1, keepdims=True)
    return (nh - mean) * lax.rsqrt(var + LN_EPS)


if __name__ == "__main__":
    B, IN, H, T = 2, 16, 32, 8

    key = jax.random.PRNGKey(0)
    kx, kh, kseq, k_wih, k_whh = jax.random.split(key, 5)

    # Deterministic init mirroring _reset_parameters:
    # weights ~ U(-1/sqrt(fan_in), 1/sqrt(fan_in)), biases = 0.
    bound_ih = 1.0 / math.sqrt(IN)
    bound_hh = 1.0 / math.sqrt(H)
    w_ih = jax.random.uniform(k_wih, (3 * H, IN), jnp.float32, -bound_ih, bound_ih)
    w_hh = jax.random.uniform(k_whh, (3 * H, H), jnp.float32, -bound_hh, bound_hh)
    b_ih = jnp.zeros((3 * H,), jnp.float32)
    b_hh = jnp.zeros((3 * H,), jnp.float32)

    # One-time parameter prep (transpose / fuse / scale-fold / bf16 cast).
    params = prepare_cfc_params(w_ih, b_ih, w_hh, b_hh)

    x = jax.random.normal(kx, (B, IN), jnp.float32)
    h0 = jax.random.normal(kh, (B, H), jnp.float32)

    # --- single step (fallback kernel) ---------------------------------------
    new_h, out = cfc_cell_forward(params, x, h0)
    jax.block_until_ready(new_h)
    ref = _reference_step(x, h0, w_ih, b_ih, w_hh, b_hh)
    assert new_h.shape == (B, H)
    # bf16 MXU operands -> relaxed tolerance vs the f32 reference.
    assert jnp.allclose(new_h, ref, atol=3e-2, rtol=3e-2), "single-step mismatch"

    # h=None (zero hidden state) path.
    nh2, _ = cfc_cell_forward(params, x)
    jax.block_until_ready(nh2)
    ref2 = _reference_step(x, jnp.zeros((B, H), jnp.float32), w_ih, b_ih, w_hh, b_hh)
    assert jnp.allclose(nh2, ref2, atol=3e-2, rtol=3e-2), "h=None mismatch"

    # --- weight-resident sequence kernel (primary path) ----------------------
    x_seq = jax.random.normal(kseq, (T, B, IN), jnp.float32)
    h_last, out_seq = cfc_cell_sequence(params, x_seq, h0)
    jax.block_until_ready(out_seq)
    assert out_seq.shape == (T, B, H)

    h_ref = h0
    for t in range(T):
        h_ref = _reference_step(x_seq[t], h_ref, w_ih, b_ih, w_hh, b_hh)
        assert jnp.allclose(out_seq[t], h_ref, atol=5e-2, rtol=5e-2), \
            f"sequence mismatch at t={t}"
    assert jnp.allclose(h_last, h_ref, atol=5e-2, rtol=5e-2), "final h mismatch"

    print("KERNEL_OK")
</pallas_src>

<mosaic_0001>
module attributes {stable_mosaic.version = 11 : i64} {
  func.func @_cfc_cell_kernel(%arg0: memref<8x16xf32, #tpu.memory_space<vmem>>, %arg1: memref<8x32xf32, #tpu.memory_space<vmem>>, %arg2: memref<16x96xbf16, #tpu.memory_space<vmem>>, %arg3: memref<32x96xbf16, #tpu.memory_space<vmem>>, %arg4: memref<1x96xf32, #tpu.memory_space<vmem>>, %arg5: memref<8x32xf32, #tpu.memory_space<vmem>>) attributes {dimension_semantics = [], scalar_prefetch = 0 : i64, scratch_operands = 0 : i64, tpu.core_type = #tpu.core_type<tc>} {
    %c0 = arith.constant 0 : index
    %c0_0 = arith.constant 0 : index
    %0 = vector.load %arg0[%c0, %c0_0] : memref<8x16xf32, #tpu.memory_space<vmem>>, vector<8x16xf32>
    %1 = arith.mulf %0, %0 : vector<8x16xf32>
    %cst = arith.constant dense<0.000000e+00> : vector<8xf32>
    %2 = vector.multi_reduction <add>, %1, %cst [1] : vector<8x16xf32> to vector<8xf32>
    %3 = vector.shape_cast %2 : vector<8xf32> to vector<8x1xf32>
    %cst_1 = arith.constant 1.000000e-16 : f32
    %4 = vector.broadcast %cst_1 : f32 to vector<8x1xf32>
    %5 = arith.addf %3, %4 : vector<8x1xf32>
    %6 = math.rsqrt %5 : vector<8x1xf32>
    %7 = vector.broadcast %6 : vector<8x1xf32> to vector<8x16xf32>
    %8 = arith.mulf %0, %7 : vector<8x16xf32>
    %c0_2 = arith.constant 0 : index
    %c0_3 = arith.constant 0 : index
    %9 = vector.load %arg1[%c0_2, %c0_3] : memref<8x32xf32, #tpu.memory_space<vmem>>, vector<8x32xf32>
    %10 = arith.mulf %9, %9 : vector<8x32xf32>
    %cst_4 = arith.constant dense<0.000000e+00> : vector<8xf32>
    %11 = vector.multi_reduction <add>, %10, %cst_4 [1] : vector<8x32xf32> to vector<8xf32>
    %12 = vector.shape_cast %11 : vector<8xf32> to vector<8x1xf32>
    %cst_5 = arith.constant 1.000000e-16 : f32
    %13 = vector.broadcast %cst_5 : f32 to vector<8x1xf32>
    %14 = arith.addf %12, %13 : vector<8x1xf32>
    %15 = math.rsqrt %14 : vector<8x1xf32>
    %16 = vector.broadcast %15 : vector<8x1xf32> to vector<8x32xf32>
    %17 = arith.mulf %9, %16 : vector<8x32xf32>
    %18 = arith.truncf %8 : vector<8x16xf32> to vector<8x16xbf16>
    %c0_6 = arith.constant 0 : index
    %c0_7 = arith.constant 0 : index
    %19 = vector.load %arg2[%c0_6, %c0_7] : memref<16x96xbf16, #tpu.memory_space<vmem>>, vector<16x96xbf16>
    %cst_8 = arith.constant dense<0.000000e+00> : vector<8x96xf32>
    %20 = tpu.matmul %18, %19, %cst_8 {dimension_numbers = #tpu.dot_dimension_numbers<[1], [0], [0], [1], [0, 0, 1, 1], [], []>} : vector<8x16xbf16>, vector<16x96xbf16>, vector<8x96xf32> -> vector<8x96xf32>
    %21 = arith.truncf %17 : vector<8x32xf32> to vector<8x32xbf16>
    %c0_9 = arith.constant 0 : index
    %c0_10 = arith.constant 0 : index
    %22 = vector.load %arg3[%c0_9, %c0_10] : memref<32x96xbf16, #tpu.memory_space<vmem>>, vector<32x96xbf16>
    %cst_11 = arith.constant dense<0.000000e+00> : vector<8x96xf32>
    %23 = tpu.matmul %21, %22, %cst_11 {dimension_numbers = #tpu.dot_dimension_numbers<[1], [0], [0], [1], [0, 0, 1, 1], [], []>} : vector<8x32xbf16>, vector<32x96xbf16>, vector<8x96xf32> -> vector<8x96xf32>
    %24 = arith.addf %20, %23 : vector<8x96xf32>
    %c0_12 = arith.constant 0 : index
    %c0_13 = arith.constant 0 : index
    %25 = vector.load %arg4[%c0_12, %c0_13] : memref<1x96xf32, #tpu.memory_space<vmem>>, vector<1x96xf32>
    %26 = vector.broadcast %25 : vector<1x96xf32> to vector<8x96xf32>
    %27 = arith.addf %24, %26 : vector<8x96xf32>
    %28 = vector.extract_strided_slice %27 {offsets = [0, 0], sizes = [8, 64], strides = [1, 1]} : vector<8x96xf32> to vector<8x64xf32>
    %29 = arith.negf %28 : vector<8x64xf32>
    %30 = math.exp %29 : vector<8x64xf32>
    %cst_14 = arith.constant 1.000000e+00 : f32
    %31 = vector.broadcast %cst_14 : f32 to vector<8x64xf32>
    %32 = arith.addf %31, %30 : vector<8x64xf32>
    %33 = arith.divf %31, %32 : vector<8x64xf32>
    %34 = vector.extract_strided_slice %33 {offsets = [0, 0], sizes = [8, 32], strides = [1, 1]} : vector<8x64xf32> to vector<8x32xf32>
    %35 = vector.extract_strided_slice %33 {offsets = [0, 32], sizes = [8, 32], strides = [1, 1]} : vector<8x64xf32> to vector<8x32xf32>
    %36 = vector.extract_strided_slice %27 {offsets = [0, 64], sizes = [8, 32], strides = [1, 1]} : vector<8x96xf32> to vector<8x32xf32>
    %37 = math.tanh %36 : vector<8x32xf32>
    %38 = arith.mulf %35, %17 : vector<8x32xf32>
    %39 = arith.mulf %34, %37 : vector<8x32xf32>
    %40 = arith.addf %38, %39 : vector<8x32xf32>
    %cst_15 = arith.constant dense<0.000000e+00> : vector<8xf32>
    %41 = vector.multi_reduction <add>, %40, %cst_15 [1] : vector<8x32xf32> to vector<8xf32>
    %42 = vector.shape_cast %41 : vector<8xf32> to vector<8x1xf32>
    %cst_16 = arith.constant 3.200000e+01 : f32
    %43 = vector.broadcast %cst_16 : f32 to vector<8x1xf32>
    %44 = arith.divf %42, %43 : vector<8x1xf32>
    %45 = arith.mulf %40, %40 : vector<8x32xf32>
    %cst_17 = arith.constant dense<0.000000e+00> : vector<8xf32>
    %46 = vector.multi_reduction <add>, %45, %cst_17 [1] : vector<8x32xf32> to vector<8xf32>
    %47 = vector.shape_cast %46 : vector<8xf32> to vector<8x1xf32>
    %cst_18 = arith.constant 3.200000e+01 : f32
    %48 = vector.broadcast %cst_18 : f32 to vector<8x1xf32>
    %49 = arith.divf %47, %48 : vector<8x1xf32>
    %50 = arith.mulf %44, %44 : vector<8x1xf32>
    %51 = arith.subf %49, %50 : vector<8x1xf32>
    %52 = vector.broadcast %44 : vector<8x1xf32> to vector<8x32xf32>
    %53 = arith.subf %40, %52 : vector<8x32xf32>
    %cst_19 = arith.constant 9.99999974E-6 : f32
    %54 = vector.broadcast %cst_19 : f32 to vector<8x1xf32>
    %55 = arith.addf %51, %54 : vector<8x1xf32>
    %56 = math.rsqrt %55 : vector<8x1xf32>
    %57 = vector.broadcast %56 : vector<8x1xf32> to vector<8x32xf32>
    %58 = arith.mulf %53, %57 : vector<8x32xf32>
    %c0_20 = arith.constant 0 : index
    %c0_21 = arith.constant 0 : index
    %59 = vector.load %arg5[%c0_20, %c0_21] : memref<8x32xf32, #tpu.memory_space<vmem>>, vector<8x32xf32>
    tpu.vector_store %arg5[%c0_20, %c0_21], %58 {strides = array<i32>} : memref<8x32xf32, #tpu.memory_space<vmem>>, vector<8x32xf32>,
    return
  }
}

</mosaic_0001>

<llo_original>
// kernel: _cfc_cell_impl.1
$region0: #{_cfc_cell_impl.1}
  #allocation0 [shape = 'u32[]', space=smem, size = 0x4, offset = 0x4, fixed_abs, tag = 'smem constant byte address 0x4 - core index']
  #allocation1 [shape = 'u32[144,128]{1,0:T(1,128)}', space=vmem, size = 0x12000, scoped, tag = 'internal scratch']
  %s0 = inlined_call_operand.vmem [shape: f32[8,16], index: 0, kind: input, shape index: {}]
  %s1 = inlined_call_operand.vmem [shape: f32[8,32], index: 1, kind: input, shape index: {}]
  %s2 = inlined_call_operand.vmem [shape: bf16[16,96], index: 2, kind: input, shape index: {}]
  %s3 = inlined_call_operand.vmem [shape: bf16[32,96], index: 3, kind: input, shape index: {}]
  %s4 = inlined_call_operand.vmem [shape: f32[1,96], index: 4, kind: input, shape index: {}]
  %s5 = inlined_call_operand.vmem [shape: f32[8,32], index: 5, kind: output, shape index: {}]
  %s6 = sld [smem:[#allocation0]]
  $region30: #{_cfc_cell_impl.1} parent=0
    _
  %s8 = ssub.s32 1, %s6
  %s9 = scalar_select 0, %s8, %s6
  // Predicated region
  $region2: #{_cfc_cell_impl.1} parent=0 // pred_check
    _
  $region3: #{_cfc_cell_impl.1} parent=0 // pred_check_branch
    %11 = sbr.rel (0) target = $region5
  $region4: #{_cfc_cell_impl.1} parent=0 // pred_region
    _
  $region5: #{_cfc_cell_impl.1} parent=0 // pred_fallthru
    _
  // Predicated region
  $region6: #{_cfc_cell_impl.1} parent=0 // pred_check
    _
  $region7: #{_cfc_cell_impl.1} parent=0 // pred_check_branch
    %13 = sbr.rel (0) target = $region9
  $region8: #{_cfc_cell_impl.1} parent=0 // pred_region
    _
  $region9: #{_cfc_cell_impl.1} parent=0 // pred_fallthru
    _
  // Predicated region
  $region10: #{_cfc_cell_impl.1} parent=0 // pred_check
    _
  $region11: #{_cfc_cell_impl.1} parent=0 // pred_check_branch
    %15 = sbr.rel (0) target = $region13
  $region12: #{_cfc_cell_impl.1} parent=0 // pred_region
    _
  $region13: #{_cfc_cell_impl.1} parent=0 // pred_fallthru
    _
  // Predicated region
  $region14: #{_cfc_cell_impl.1} parent=0 // pred_check
    _
  $region15: #{_cfc_cell_impl.1} parent=0 // pred_check_branch
    %17 = sbr.rel (0) target = $region17
  $region16: #{_cfc_cell_impl.1} parent=0 // pred_region
    _
  $region17: #{_cfc_cell_impl.1} parent=0 // pred_fallthru
    _
  // Predicated region
  $region18: #{_cfc_cell_impl.1} parent=0 // pred_check
    _
  $region19: #{_cfc_cell_impl.1} parent=0 // pred_check_branch
    %19 = sbr.rel (0) target = $region21
  $region20: #{_cfc_cell_impl.1} parent=0 // pred_region
    _
  $region21: #{_cfc_cell_impl.1} parent=0 // pred_fallthru
    _
  %v21 = vld [vmem:[%s0] sm:$0xff]
  %v22 = vmul.f32 %v21, %v21
  %vm23 = vcmask 130048
  %v24 = vsel %vm23, %v22, 0.0
  %25 = vadd.xlane.f32.xlu0 %v24
  %v26 = vpop.xlane.xlu0 %25
  %v27 = vadd.f32 %v26, 1e-16
  %v28 = vrsqrt.pop %v27
  %v29 = vmul.f32 %v21, %v28
  %v30 = vld [vmem:[%s1] sm:$0xff]
  %v31 = vmul.f32 %v30, %v30
  %vm32 = vcmask 261120
  %v33 = vsel %vm32, %v31, 0.0
  %34 = vadd.xlane.f32.xlu0 %v33
  %v35 = vpop.xlane.xlu0 %34
  %v36 = vadd.f32 %v35, 1e-16
  %v37 = vrsqrt.pop %v36
  %v38 = vmul.f32 %v30, %v37
  %v39 = vpack.c.bf16 %v29, %v29
  %v40 = vld [vmem:[%s2] sm:$0xf]
  %v41 = vld [vmem:[%s2 + $0x4] sm:$0xf]
  %v42 = vpack.c.bf16 %v38, %v38
  %v43 = vld [vmem:[%s3] sm:$0xf]
  %v44 = vld [vmem:[%s3 + $0x4] sm:$0xf]
  %v45 = vld [vmem:[%s3 + $0x8] sm:$0xf]
  %v46 = vld [vmem:[%s3 + $0xc] sm:$0xf]
  %v51 = vunpack.c.l.b16 %v43
  %v52 = vunpack.c.l.b16 %v44
  %v53 = vunpack.c.l.b16 %v45
  %v54 = vunpack.c.l.b16 %v46
  %v55 = vpack.c.b16 %v52, %v51
  %v56 = vpack.c.b16 %v54, %v53
  %v60 = vsel %vm32, %v42, 0
  %62 = vmatprep.subr.bf16.mxu0 0
  %63 = vmatpush1.bf16.msra.mxu0 %v55
  %64 = vmatprep.subr.bf16.mxu0 0
  %65 = vmatpush1.bf16.msra.mxu0 %v56
  %66 = vmatprep.subr.bf16.mxu0 0
  %67 = vmatpush1.bf16.msra.mxu0 0
  %68 = vmatprep.subr.bf16.mxu0 0
  %69 = vmatpush1.bf16.msra.mxu0 0
  %70 = vmatprep.subr.bf16.mxu0 0
  %71 = vmatpush1.bf16.msra.mxu0 0
  %72 = vmatprep.subr.bf16.mxu0 0
  %73 = vmatpush1.bf16.msra.mxu0 0
  %74 = vmatprep.subr.bf16.mxu0 0
  %75 = vmatpush1.bf16.msra.mxu0 0
  %76 = vmatprep.subr.bf16.mxu0 0
  %77 = vmatpush1.bf16.msra.mxu0 0
  %78 = vmatprep.subr.bf16.mxu0 0
  %79 = vmatpush1.bf16.msra.mxu0 0
  %80 = vmatprep.subr.bf16.mxu0 0
  %81 = vmatpush1.bf16.msra.mxu0 0
  %82 = vmatprep.subr.bf16.mxu0 0
  %83 = vmatpush1.bf16.msra.mxu0 0
  %84 = vmatprep.subr.bf16.mxu0 0
  %85 = vmatpush1.bf16.msra.mxu0 0
  %86 = vmatprep.subr.bf16.mxu0 0
  %87 = vmatpush1.bf16.msra.mxu0 0
  %88 = vmatprep.subr.bf16.mxu0 0
  %89 = vmatpush1.bf16.msra.mxu0 0
  %90 = vmatprep.subr.bf16.mxu0 0
  %91 = vmatpush1.bf16.msra.mxu0 0
  %92 = vmatprep.subr.bf16.mxu0 0
  %93 = vmatpush1.bf16.msra.mxu0 0
  %94 = vmatprep.mubr.bf16.mxu0 0
  %95 = vmatmul.mubr.bf16.gmra.mrb[0].mxu0 %v60
  %v96 = vpop.f32.mrb[0].mxu0
  %v97 = vadd.f32 0.0, %v96
  %v98 = vpop.f32.mrb[0].mxu0
  %v99 = vpop.f32.mrb[0].mxu0
  %v100 = vpop.f32.mrb[0].mxu0
  %101 = vdwg.mxu0
  %v104 = vunpack.c.l.b16 %v40
  %v105 = vunpack.c.l.b16 %v41
  %v106 = vpack.c.b16 %v105, %v104
  %v109 = vsel %vm23, %v39, 0
  %111 = vmatprep.subr.bf16.mxu0 0
  %112 = vmatpush1.bf16.msra.mxu0 %v106
  %113 = vmatprep.subr.bf16.mxu0 0
  %114 = vmatpush1.bf16.msra.mxu0 0
  %115 = vmatprep.subr.bf16.mxu0 0
  %116 = vmatpush1.bf16.msra.mxu0 0
  %117 = vmatprep.subr.bf16.mxu0 0
  %118 = vmatpush1.bf16.msra.mxu0 0
  %119 = vmatprep.subr.bf16.mxu0 0
  %120 = vmatpush1.bf16.msra.mxu0 0
  %121 = vmatprep.subr.bf16.mxu0 0
  %122 = vmatpush1.bf16.msra.mxu0 0
  %123 = vmatprep.subr.bf16.mxu0 0
  %124 = vmatpush1.bf16.msra.mxu0 0
  %125 = vmatprep.subr.bf16.mxu0 0
  %126 = vmatpush1.bf16.msra.mxu0 0
  %127 = vmatprep.subr.bf16.mxu0 0
  %128 = vmatpush1.bf16.msra.mxu0 0
  %129 = vmatprep.subr.bf16.mxu0 0
  %130 = vmatpush1.bf16.msra.mxu0 0
  %131 = vmatprep.subr.bf16.mxu0 0
  %132 = vmatpush1.bf16.msra.mxu0 0
  %133 = vmatprep.subr.bf16.mxu0 0
  %134 = vmatpush1.bf16.msra.mxu0 0
  %135 = vmatprep.subr.bf16.mxu0 0
  %136 = vmatpush1.bf16.msra.mxu0 0
  %137 = vmatprep.subr.bf16.mxu0 0
  %138 = vmatpush1.bf16.msra.mxu0 0
  %139 = vmatprep.subr.bf16.mxu0 0
  %140 = vmatpush1.bf16.msra.mxu0 0
  %141 = vmatprep.subr.bf16.mxu0 0
  %142 = vmatpush1.bf16.msra.mxu0 0
  %143 = vmatprep.mubr.bf16.mxu0 0
  %144 = vmatmul.mubr.bf16.gmra.mrb[0].mxu0 %v109
  %v145 = vpop.f32.mrb[0].mxu0
  %v146 = vadd.f32 %v97, %v145
  %v147 = vpop.f32.mrb[0].mxu0
  %v148 = vpop.f32.mrb[0].mxu0
  %v149 = vpop.f32.mrb[0].mxu0
  %150 = vdwg.mxu0
  %v151 = vld [vmem:[%s4] sm:$0x1]
  %v153 = vlaneseq
  %v154 = vshrl.u32 %v153, 7
  %v155 = vsub.s32 0, %v154
  %v156 = vrot.slane %v151, %v155
  %v158 = vadd.f32 %v146, %v156
  %v159 = vxor.u32 %v158, 2147483648
  %v160 = vmul.f32 %v159, 1.442695
  %v161 = vpow.pop %v160
  %v162 = vadd.f32 %v161, 1.0
  %v163 = vrcp.pop %v162
  %v164 = vmul.f32 1.0, %v163
  %v165 = vtanh.pop %v158
  %167 = vrot.lane.b32.xlu0 %v38, 32
  %v168 = vpop.permute.xlu0 %167
  %v170 = vmul.f32 %v164, %v168
  %172 = vrot.lane.b32.xlu0 %v165, 64
  %v173 = vpop.permute.xlu0 %172
  %v175 = vmul.f32 %v164, %v173
  %177 = vrot.lane.b32.xlu0 %v175, 32
  %v178 = vpop.permute.xlu0 %177
  %v180 = vadd.f32 %v170, %v178
  %182 = vrot.lane.b32.xlu0 %v180, 96
  %v183 = vpop.permute.xlu0 %182
  %v185 = vsel %vm32, %v183, 0.0
  %186 = vadd.xlane.f32.xlu0 %v185
  %v187 = vpop.xlane.xlu0 %186
  %v188 = vrcp.pop 32.0
  %v189 = vmul.f32 %v187, %v188
  %v190 = vmul.f32 %v180, %v180
  %192 = vrot.lane.b32.xlu0 %v190, 96
  %v193 = vpop.permute.xlu0 %192
  %v195 = vsel %vm32, %v193, 0.0
  %196 = vadd.xlane.f32.xlu0 %v195
  %v197 = vpop.xlane.xlu0 %196
  %v198 = vmul.f32 %v197, %v188
  %v199 = vmul.f32 %v189, %v189
  %v200 = vsub.f32 %v198, %v199
  %v201 = vsub.f32 %v180, %v189
  %v202 = vadd.f32 %v200, 1e-05
  %v203 = vrsqrt.pop %v202
  %v204 = vmul.f32 %v201, %v203
  %206 = vrot.lane.b32.xlu0 %v204, 96
  %v207 = vpop.permute.xlu0 %206
  %209 = vst.msk [vmem:[%s5] sm:$0xff] %vm32, %v207
  // Predicated region
  $region22: #{_cfc_cell_impl.1} parent=0 // pred_check
    _
  $region23: #{_cfc_cell_impl.1} parent=0 // pred_check_branch
    %211 = sbr.rel (0) target = $region25
  $region24: #{_cfc_cell_impl.1} parent=0 // pred_region
    _
  $region25: #{_cfc_cell_impl.1} parent=0 // pred_fallthru
    _
  // Predicated region
  $region26: #{_cfc_cell_impl.1} parent=0 // pred_check
    _
  $region27: #{_cfc_cell_impl.1} parent=0 // pred_check_branch
    %213 = sbr.rel (0) target = $region29
  $region28: #{_cfc_cell_impl.1} parent=0 // pred_region
    _
  $region29: #{_cfc_cell_impl.1} parent=0 // pred_fallthru
    _

</llo_original>
